<compile_context>
chip_gen: v7x
topology: tpu7x:2x2x1
jax: 0.10.0
libtpu: 0.0.40
codegen_flags: <defaults>
</compile_context>

<pallas_src>
import functools

import jax
import jax.numpy as jnp
import numpy as np
from jax.experimental import pallas as pl
from jax.experimental.pallas import tpu as pltpu


def _conv1d_same_kernel(x_ref, w_ref, b_ref, o_ref, *, ksize, seq_len):
    """One batch element: out[s, :] = bias + sum_k x_pad[s + k, :] @ W[k]."""
    x = x_ref[0]                                   # [S + K - 1, H_in] (zero padded)
    # Init accumulator with the broadcast bias (f32).
    acc = jnp.broadcast_to(b_ref[...].astype(jnp.float32),
                           o_ref.shape[1:])        # [S, H_out]
    for k in range(ksize):                         # K is small & static -> unrolled
        acc = acc + jnp.dot(x[k:k + seq_len, :], w_ref[k],
                            preferred_element_type=jnp.float32)
    o_ref[0] = acc.astype(o_ref.dtype)


def conv1d_same(x, weight, bias):
    """Pallas equivalent of CNN.forward.

    x:      [B, S, H_in]      (channels-last; the module's two transposes cancel)
    weight: [H_out, H_in, K]  (PyTorch Conv1d weight layout)
    bias:   [H_out]
    returns [B, S, H_out]
    """
    B, S, H_in = x.shape
    H_out, H_in_w, K = weight.shape
    assert H_in_w == H_in
    # PyTorch padding='same' (stride=1, dilation=1): left = (K-1)//2, right = rest.
    left = (K - 1) // 2
    right = (K - 1) - left
    x_pad = jnp.pad(x, ((0, 0), (left, right), (0, 0)))
    s_pad = S + K - 1
    # Per-tap matmul weights, lane-dense on H_out: w_taps[k] = weight[:, :, k].T
    w_taps = jnp.transpose(weight, (2, 1, 0)).astype(x.dtype)   # [K, H_in, H_out]

    kernel = functools.partial(_conv1d_same_kernel, ksize=K, seq_len=S)
    return pl.pallas_call(
        kernel,
        out_shape=jax.ShapeDtypeStruct((B, S, H_out), x.dtype),
        grid=(B,),
        in_specs=[
            pl.BlockSpec((1, s_pad, H_in), lambda b: (b, 0, 0)),
            pl.BlockSpec((K, H_in, H_out), lambda b: (0, 0, 0)),
            pl.BlockSpec((1, H_out), lambda b: (0, 0)),
        ],
        out_specs=pl.BlockSpec((1, S, H_out), lambda b: (b, 0, 0)),
        compiler_params=pltpu.CompilerParams(
            dimension_semantics=("parallel",)),
        # TODO(synk): for production sizes (S >> 8, H >= 768) add an S-tile grid
        # axis with a K-1 halo on the x BlockSpec, tile H_out, optionally do an
        # in-VMEM im2col (K*H_in contraction) so each MXU pass sees a >=128-deep
        # contraction, and feed the MXU in bf16 with f32 accumulation.
    )(x_pad, w_taps, bias.reshape(1, H_out))


if __name__ == "__main__":
    # Shapes implied by the module: x is [batch, seq, hidden_size]; the Conv1d
    # mixes the hidden channels along the sequence axis with a small odd kernel.
    B, S, H, K = 2, 8, 32, 3

    key = jax.random.PRNGKey(0)
    k_x, k_w, k_b = jax.random.split(key, 3)
    x = jax.random.normal(k_x, (B, S, H), jnp.float32)
    weight = 0.1 * jax.random.normal(k_w, (H, H, K), jnp.float32)   # [out, in, k]
    bias = 0.1 * jax.random.normal(k_b, (H,), jnp.float32)

    out = jax.jit(conv1d_same)(x, weight, bias)
    jax.block_until_ready(out)

    # Reference: same math in numpy (channels-last shifted matmuls == Conv1d
    # with padding='same' on the transposed layout, transposed back).
    x_np = np.asarray(x, np.float32)
    w_np = np.asarray(weight, np.float32)
    b_np = np.asarray(bias, np.float32)
    left = (K - 1) // 2
    x_pad_np = np.pad(x_np, ((0, 0), (left, (K - 1) - left), (0, 0)))
    ref = np.zeros((B, S, H), np.float32)
    for k in range(K):
        ref += np.einsum("bsh,oh->bso", x_pad_np[:, k:k + S, :], w_np[:, :, k])
    ref += b_np

    assert out.shape == (B, S, H) and out.dtype == jnp.float32
    np.testing.assert_allclose(np.asarray(out), ref, rtol=2e-2, atol=2e-2)
    print("KERNEL_OK")
</pallas_src>

<mosaic_0001>
module attributes {stable_mosaic.version = 11 : i64} {
  func.func @_conv1d_same_kernel(%arg0: i32, %arg1: memref<1x10x32xf32, #tpu.memory_space<vmem>>, %arg2: memref<3x32x32xf32, #tpu.memory_space<vmem>>, %arg3: memref<1x32xf32, #tpu.memory_space<vmem>>, %arg4: memref<1x8x32xf32, #tpu.memory_space<vmem>>) attributes {dimension_semantics = [#tpu.dimension_semantics<parallel>], iteration_bounds = array<i64: 2>, scalar_prefetch = 0 : i64, scratch_operands = 0 : i64, tpu.core_type = #tpu.core_type<tc>, window_params = [{transform_indices = @transform_0, window_bounds = array<i64: 1, 10, 32>}, {pipeline_mode = #tpu.pipeline_mode<synchronous>, transform_indices = @transform_1, window_bounds = array<i64: 3, 32, 32>}, {pipeline_mode = #tpu.pipeline_mode<synchronous>, transform_indices = @transform_2, window_bounds = array<i64: 1, 32>}, {transform_indices = @transform_3, window_bounds = array<i64: 1, 8, 32>}]} {
    %c0 = arith.constant 0 : index
    %c0_0 = arith.constant 0 : index
    %c0_1 = arith.constant 0 : index
    %0 = vector.load %arg1[%c0, %c0_0, %c0_1] : memref<1x10x32xf32, #tpu.memory_space<vmem>>, vector<1x10x32xf32>
    %1 = vector.shape_cast %0 : vector<1x10x32xf32> to vector<10x32xf32>
    %c0_2 = arith.constant 0 : index
    %c0_3 = arith.constant 0 : index
    %2 = vector.load %arg3[%c0_2, %c0_3] : memref<1x32xf32, #tpu.memory_space<vmem>>, vector<1x32xf32>
    %3 = vector.shape_cast %2 : vector<1x32xf32> to vector<1x32xf32>
    %4 = vector.broadcast %3 : vector<1x32xf32> to vector<8x32xf32>
    %5 = vector.extract_strided_slice %1 {offsets = [0, 0], sizes = [8, 32], strides = [1, 1]} : vector<10x32xf32> to vector<8x32xf32>
    %c0_4 = arith.constant 0 : index
    %c0_5 = arith.constant 0 : index
    %c0_6 = arith.constant 0 : index
    %6 = vector.load %arg2[%c0_4, %c0_5, %c0_6] : memref<3x32x32xf32, #tpu.memory_space<vmem>>, vector<1x32x32xf32>
    %7 = vector.shape_cast %6 : vector<1x32x32xf32> to vector<32x32xf32>
    %cst = arith.constant dense<0.000000e+00> : vector<8x32xf32>
    %8 = tpu.matmul %5, %7, %cst {dimension_numbers = #tpu.dot_dimension_numbers<[1], [0], [0], [1], [0, 0, 1, 1], [], []>} : vector<8x32xf32>, vector<32x32xf32>, vector<8x32xf32> -> vector<8x32xf32>
    %9 = arith.addf %4, %8 : vector<8x32xf32>
    %10 = vector.extract_strided_slice %1 {offsets = [1, 0], sizes = [8, 32], strides = [1, 1]} : vector<10x32xf32> to vector<8x32xf32>
    %c1 = arith.constant 1 : index
    %c0_7 = arith.constant 0 : index
    %c0_8 = arith.constant 0 : index
    %11 = vector.load %arg2[%c1, %c0_7, %c0_8] : memref<3x32x32xf32, #tpu.memory_space<vmem>>, vector<1x32x32xf32>
    %12 = vector.shape_cast %11 : vector<1x32x32xf32> to vector<32x32xf32>
    %cst_9 = arith.constant dense<0.000000e+00> : vector<8x32xf32>
    %13 = tpu.matmul %10, %12, %cst_9 {dimension_numbers = #tpu.dot_dimension_numbers<[1], [0], [0], [1], [0, 0, 1, 1], [], []>} : vector<8x32xf32>, vector<32x32xf32>, vector<8x32xf32> -> vector<8x32xf32>
    %14 = arith.addf %9, %13 : vector<8x32xf32>
    %15 = vector.extract_strided_slice %1 {offsets = [2, 0], sizes = [8, 32], strides = [1, 1]} : vector<10x32xf32> to vector<8x32xf32>
    %c2 = arith.constant 2 : index
    %c0_10 = arith.constant 0 : index
    %c0_11 = arith.constant 0 : index
    %16 = vector.load %arg2[%c2, %c0_10, %c0_11] : memref<3x32x32xf32, #tpu.memory_space<vmem>>, vector<1x32x32xf32>
    %17 = vector.shape_cast %16 : vector<1x32x32xf32> to vector<32x32xf32>
    %cst_12 = arith.constant dense<0.000000e+00> : vector<8x32xf32>
    %18 = tpu.matmul %15, %17, %cst_12 {dimension_numbers = #tpu.dot_dimension_numbers<[1], [0], [0], [1], [0, 0, 1, 1], [], []>} : vector<8x32xf32>, vector<32x32xf32>, vector<8x32xf32> -> vector<8x32xf32>
    %19 = arith.addf %14, %18 : vector<8x32xf32>
    %c0_13 = arith.constant 0 : index
    %c0_14 = arith.constant 0 : index
    %c0_15 = arith.constant 0 : index
    %20 = vector.load %arg4[%c0_13, %c0_14, %c0_15] : memref<1x8x32xf32, #tpu.memory_space<vmem>>, vector<1x8x32xf32>
    %21 = vector.shape_cast %20 : vector<1x8x32xf32> to vector<8x32xf32>
    %22 = vector.shape_cast %19 : vector<8x32xf32> to vector<1x8x32xf32>
    tpu.vector_store %arg4[%c0_13, %c0_14, %c0_15], %22 {strides = array<i32>} : memref<1x8x32xf32, #tpu.memory_space<vmem>>, vector<1x8x32xf32>,
    return
  }
  func.func @transform_0(%arg0: i32) -> (i32, i32, i32) {
    %c0_i32 = arith.constant 0 : i32
    %c0_i32_0 = arith.constant 0 : i32
    %c0_i32_1 = arith.constant 0 : i32
    return %arg0, %c0_i32, %c0_i32_0 : i32, i32, i32
  }
  func.func @transform_1(%arg0: i32) -> (i32, i32, i32) {
    %c0_i32 = arith.constant 0 : i32
    %c0_i32_0 = arith.constant 0 : i32
    %c0_i32_1 = arith.constant 0 : i32
    %c0_i32_2 = arith.constant 0 : i32
    return %c0_i32, %c0_i32_0, %c0_i32_1 : i32, i32, i32
  }
  func.func @transform_2(%arg0: i32) -> (i32, i32) {
    %c0_i32 = arith.constant 0 : i32
    %c0_i32_0 = arith.constant 0 : i32
    %c0_i32_1 = arith.constant 0 : i32
    return %c0_i32, %c0_i32_0 : i32, i32
  }
  func.func @transform_3(%arg0: i32) -> (i32, i32, i32) {
    %c0_i32 = arith.constant 0 : i32
    %c0_i32_0 = arith.constant 0 : i32
    %c0_i32_1 = arith.constant 0 : i32
    return %arg0, %c0_i32, %c0_i32_0 : i32, i32, i32
  }
}

</mosaic_0001>

<llo_original>
// kernel: conv1d_same.1
$region0: #{conv1d_same.1}
  #allocation0 [shape = 'u32[]', space=smem, size = 0x4, offset = 0x4, fixed_abs, tag = 'smem constant byte address 0x4 - core index']
  #allocation1 [shape = 'u32[144,128]{1,0:T(1,128)}', space=vmem, size = 0x12000, scoped, tag = 'internal scratch']
  %s0 = inlined_call_operand.vmem [shape: f32[2,10,32], index: 0, kind: input, shape index: {}]
  %s1 = inlined_call_operand.vmem [shape: f32[3,32,32], index: 1, kind: input, shape index: {}]
  %s2 = inlined_call_operand.vmem [shape: f32[1,32], index: 2, kind: input, shape index: {}]
  %s3 = inlined_call_operand.hbm [shape: f32[2,8,32], index: 3, kind: output, shape index: {}]
  %s4 = sld [smem:[#allocation0]]
  $region45: #{conv1d_same.1} parent=0
    _
  %s6 = ssub.s32 1, %s4
  %s7 = scalar_select 0, %s6, %s4
  $region1: #{conv1d_same.1} parent=0
    #allocation2 [shape = 'u8[8192]{0}', space=vmem, size = 0x2000, scoped, tag = 'output window, operand 0']
    #allocation3 [shape = 's32[2]{0}', space=sflag, size = 0x8, scoped, tag = 'scoped memory for conv1d_same.1']
    %8 = vsyncpa [#allocation3], 0
    %s9 = scalar_lea.sflag [#allocation3], 1
    %10 = vsyncpa %s9, 0
    loop: start=0, step=1, limit=4
    $region2: #{conv1d_same.1} parent=1 // loop_pre_header
      _
    $region3: #{conv1d_same.1} parent=1 // loop_header
      %s12 = sphi 0, %s16
      %p13 = scmp.ge.s32.totalorder %s12, 4
      %s22 = sphi 0, %s24
      %s25 = sphi 0, %s22
      %s26 = sphi 0, %s25
      %s42 = sphi 0, %s26
      %s46 = sphi 0, %s46
      %s48 = sphi 0, %s46
      %s49 = sphi 0, %s48
      %s63 = sphi 0, %s49
      %s67 = sphi 0, %s67
      %s69 = sphi 0, %s67
      %s70 = sphi 0, %s69
      %s84 = sphi 0, %s70
      %s90 = sphi 0, %s92
      %s93 = sphi 0, %s90
      %s94 = sphi 0, %s93
      %s110 = sphi 0, %s94
    $region4: #{conv1d_same.1} parent=1 // loop_header_branch
      %15 = sbr.rel (%p13) target = $region8
    $region5: #{conv1d_same.1} parent=1 // loop_body
      %s17 = ssub.s32 %s12, 1
      %s18 = ssub.s32 %s12, 2
      %s19 = sadd.s32 %s12, 1
      %s20 = ssub.s32 %s12, %s19
      %p21 = scmp.eq.s32.totalorder %s20, 0
      %s23 = sadd.s32 %s22, 1
      %s24 = scalar_select %p21, %s22, %s23
      %p27 = pneg %p21
      %p28 = scmp.eq.s32.totalorder %s12, 1
      %p29 = por %p27, %p28
      %p30 = scmp.ne.s32.totalorder %s22, %s25
      %p31 = scmp.eq.s32.totalorder %s12, 0
      %p32 = por %p30, %p31
      %p33 = scmp.ne.s32.totalorder %s22, %s25
      %p34 = scmp.eq.s32.totalorder %s17, 1
      %p35 = por %p33, %p34
      %p36 = scmp.ne.s32.totalorder %s25, %s26
      %p37 = scmp.eq.s32.totalorder %s17, 0
      %p38 = por %p36, %p37
      %p39 = scmp.ne.s32.totalorder %s25, %s26
      %p40 = scmp.eq.s32.totalorder %s18, 1
      %p41 = por %p39, %p40
      %p43 = scmp.ne.s32.totalorder %s26, %s42
      %p44 = scmp.eq.s32.totalorder %s18, 0
      %p45 = por %p43, %p44
      %s47 = sadd.s32 %s46, 1
      %p50 = scmp.eq.s32.totalorder %s12, 1
      %p51 = scmp.ne.s32.totalorder %s46, %s48
      %p52 = scmp.eq.s32.totalorder %s12, 0
      %p53 = por %p51, %p52
      %p54 = scmp.ne.s32.totalorder %s46, %s48
      %p55 = scmp.eq.s32.totalorder %s17, 1
      %p56 = por %p54, %p55
      %p57 = scmp.ne.s32.totalorder %s48, %s49
      %p58 = scmp.eq.s32.totalorder %s17, 0
      %p59 = por %p57, %p58
      %p60 = scmp.ne.s32.totalorder %s48, %s49
      %p61 = scmp.eq.s32.totalorder %s18, 1
      %p62 = por %p60, %p61
      %p64 = scmp.ne.s32.totalorder %s49, %s63
      %p65 = scmp.eq.s32.totalorder %s18, 0
      %p66 = por %p64, %p65
      %s68 = sadd.s32 %s67, 1
      %p71 = scmp.eq.s32.totalorder %s12, 1
      %p72 = scmp.ne.s32.totalorder %s67, %s69
      %p73 = scmp.eq.s32.totalorder %s12, 0
      %p74 = por %p72, %p73
      %p75 = scmp.ne.s32.totalorder %s67, %s69
      %p76 = scmp.eq.s32.totalorder %s17, 1
      %p77 = por %p75, %p76
      %p78 = scmp.ne.s32.totalorder %s69, %s70
      %p79 = scmp.eq.s32.totalorder %s17, 0
      %p80 = por %p78, %p79
      %p81 = scmp.ne.s32.totalorder %s69, %s70
      %p82 = scmp.eq.s32.totalorder %s18, 1
      %p83 = por %p81, %p82
      %p85 = scmp.ne.s32.totalorder %s70, %s84
      %p86 = scmp.eq.s32.totalorder %s18, 0
      %p87 = por %p85, %p86
      %s88 = ssub.s32 %s12, %s19
      %p89 = scmp.eq.s32.totalorder %s88, 0
      %s91 = sadd.s32 %s90, 1
      %s92 = scalar_select %p89, %s90, %s91
      %p95 = pneg %p89
      %p96 = scmp.eq.s32.totalorder %s12, 1
      %p97 = por %p95, %p96
      %p98 = scmp.ne.s32.totalorder %s90, %s93
      %p99 = scmp.eq.s32.totalorder %s12, 0
      %p100 = por %p98, %p99
      %p101 = scmp.ne.s32.totalorder %s90, %s93
      %p102 = scmp.eq.s32.totalorder %s17, 1
      %p103 = por %p101, %p102
      %p104 = scmp.ne.s32.totalorder %s93, %s94
      %p105 = scmp.eq.s32.totalorder %s17, 0
      %p106 = por %p104, %p105
      %p107 = scmp.ne.s32.totalorder %s93, %s94
      %p108 = scmp.eq.s32.totalorder %s18, 1
      %p109 = por %p107, %p108
      %p111 = scmp.ne.s32.totalorder %s94, %s110
      %p112 = scmp.eq.s32.totalorder %s18, 0
      %p113 = por %p111, %p112
      %p114 = scmp.le.s32.totalorder 1, %s12
      %p115 = scmp.lt.s32.totalorder %s12, 3
      %p116 = pnand %p114, %p115
      %p117 = pneg %p116
      // Predicated region
      $region9: #{conv1d_same.1} parent=5 // pred_check
        _
      $region10: #{conv1d_same.1} parent=5 // pred_check_branch
        %119 = sbr.rel (%p116) target = $region12
      $region11: #{conv1d_same.1} parent=5 // pred_region
        %s120 = ssub.s32 %s12, 1
        // Predicated region
        $region13: #{conv1d_same.1} parent=11 // pred_check
          %p121 = pneg %p59
        $region14: #{conv1d_same.1} parent=11 // pred_check_branch
          %123 = sbr.rel (%p121) target = $region16
        $region15: #{conv1d_same.1} parent=11 // pred_region
          _
        $region16: #{conv1d_same.1} parent=11 // pred_fallthru
          _
        // Predicated region
        $region17: #{conv1d_same.1} parent=11 // pred_check
          %p124 = pneg %p80
        $region18: #{conv1d_same.1} parent=11 // pred_check_branch
          %126 = sbr.rel (%p124) target = $region20
        $region19: #{conv1d_same.1} parent=11 // pred_region
          _
        $region20: #{conv1d_same.1} parent=11 // pred_fallthru
          _
      $region12: #{conv1d_same.1} parent=5 // pred_fallthru
        _
      %p127 = scmp.lt.s32.totalorder %s12, 2
      // Predicated region
      $region21: #{conv1d_same.1} parent=5 // pred_check
        %p128 = pneg %p127
      $region22: #{conv1d_same.1} parent=5 // pred_check_branch
        %130 = sbr.rel (%p128) target = $region24
      $region23: #{conv1d_same.1} parent=5 // pred_region
        // Predicated region
        $region25: #{conv1d_same.1} parent=23 // pred_check
          %p131 = pneg %p32
        $region26: #{conv1d_same.1} parent=23 // pred_check_branch
          %133 = sbr.rel (%p131) target = $region28
        $region27: #{conv1d_same.1} parent=23 // pred_region
          %p134 = scmp.lt.s32.totalorder %s12, 1
          %s135 = scalar_select %p134, %s12, 1
          %s136 = smul.addr %s135, 2
          %s137 = smul.addr %s136, 8
          %s138 = scalar_lea.vmem %s0, %s137
        $region28: #{conv1d_same.1} parent=23 // pred_fallthru
          _
      $region24: #{conv1d_same.1} parent=5 // pred_fallthru
        _
      %p139 = scmp.le.s32.totalorder 1, %s12
      %p140 = scmp.lt.s32.totalorder %s12, 3
      %p141 = pnand %p139, %p140
      %p142 = pneg %p141
      // Predicated region
      $region29: #{conv1d_same.1} parent=5 // pred_check
        _
      $region30: #{conv1d_same.1} parent=5 // pred_check_branch
        %144 = sbr.rel (%p141) target = $region32
      $region31: #{conv1d_same.1} parent=5 // pred_region
        %s145 = ssub.s32 %s12, 1
        %p146 = scmp.lt.s32.totalorder %s17, 1
        %s147 = scalar_select %p146, %s17, 1
        %s148 = smul.addr %s147, 2
        %s149 = smul.addr %s148, 8
        %s150 = scalar_lea.vmem %s0, %s149
        %p151 = pneg %p38
        %p152 = pneg %p35
        %p153 = pneg %p59
        %p154 = pneg %p56
        %p155 = pneg %p80
        %p156 = pneg %p77
        %p157 = pneg %p106
        %p158 = pneg %p103
        %s159 = sand.u32 %s93, 1
        %s160 = scalar_lea.sflag [#allocation3], %s159
        %s161 = sand.u32 %s93, 1
        %s162 = smul.addr %s161, 8
        %s163 = scalar_lea.vmem [#allocation2], %s162
        %p164 = scmp.lt.s32.totalorder %s17, 1
        %s165 = scalar_select %p164, %s17, 1
        %s166 = smul.addr %s165, 2
        %s167 = smul.addr %s166, 8
        %s168 = scalar_lea.vmem %s0, %s167
        %v169 = vld [vmem:[%s168] sm:$0xff]
        %v170 = vld [vmem:[%s168 + $0x8] sm:$0x3]
        %v171 = vld [vmem:[%s2] sm:$0x1]
        %v173 = vlaneseq
        %v174 = vshrl.u32 %v173, 7
        %v175 = vsub.s32 0, %v174
        %v176 = vrot.slane %v171, %v175
        %v178 = vld [vmem:[%s1] sm:$0xff]
        %v179 = vld [vmem:[%s1 + $0x8] sm:$0xff]
        %v180 = vld [vmem:[%s1 + $0x10] sm:$0xff]
        %v181 = vld [vmem:[%s1 + $0x18] sm:$0xff]
        %vm182 = vcmask 261120
        %v184 = vsel %vm182, %v169, 0
        %186 = vmatprep.subr.mxu0 0.0
        %187 = vmatpush1.msra.mxu0 %v178
        %188 = vmatprep.subr.mxu0 0.0
        %189 = vmatpush1.msra.mxu0 %v179
        %190 = vmatprep.subr.mxu0 0.0
        %191 = vmatpush1.msra.mxu0 %v180
        %192 = vmatprep.subr.mxu0 0.0
        %193 = vmatpush1.msra.mxu0 %v181
        %194 = vmatprep.subr.mxu0 0.0
        %195 = vmatpush1.msra.mxu0 0.0
        %196 = vmatprep.subr.mxu0 0.0
        %197 = vmatpush1.msra.mxu0 0.0
        %198 = vmatprep.subr.mxu0 0.0
        %199 = vmatpush1.msra.mxu0 0.0
        %200 = vmatprep.subr.mxu0 0.0
        %201 = vmatpush1.msra.mxu0 0.0
        %202 = vmatprep.subr.mxu0 0.0
        %203 = vmatpush1.msra.mxu0 0.0
        %204 = vmatprep.subr.mxu0 0.0
        %205 = vmatpush1.msra.mxu0 0.0
        %206 = vmatprep.subr.mxu0 0.0
        %207 = vmatpush1.msra.mxu0 0.0
        %208 = vmatprep.subr.mxu0 0.0
        %209 = vmatpush1.msra.mxu0 0.0
        %210 = vmatprep.subr.mxu0 0.0
        %211 = vmatpush1.msra.mxu0 0.0
        %212 = vmatprep.subr.mxu0 0.0
        %213 = vmatpush1.msra.mxu0 0.0
        %214 = vmatprep.subr.mxu0 0.0
        %215 = vmatpush1.msra.mxu0 0.0
        %216 = vmatprep.subr.mxu0 0.0
        %217 = vmatpush1.msra.mxu0 0.0
        %218 = vmatprep.subr.mxu0 0.0
        %219 = vmatpush1.msra.mxu0 0.0
        %220 = vmatprep.subr.mxu0 0.0
        %221 = vmatpush1.msra.mxu0 0.0
        %222 = vmatprep.subr.mxu0 0.0
        %223 = vmatpush1.msra.mxu0 0.0
        %224 = vmatprep.subr.mxu0 0.0
        %225 = vmatpush1.msra.mxu0 0.0
        %226 = vmatprep.subr.mxu0 0.0
        %227 = vmatpush1.msra.mxu0 0.0
        %228 = vmatprep.subr.mxu0 0.0
        %229 = vmatpush1.msra.mxu0 0.0
        %230 = vmatprep.subr.mxu0 0.0
        %231 = vmatpush1.msra.mxu0 0.0
        %232 = vmatprep.subr.mxu0 0.0
        %233 = vmatpush1.msra.mxu0 0.0
        %234 = vmatprep.subr.mxu0 0.0
        %235 = vmatpush1.msra.mxu0 0.0
        %236 = vmatprep.subr.mxu0 0.0
        %237 = vmatpush1.msra.mxu0 0.0
        %238 = vmatprep.subr.mxu0 0.0
        %239 = vmatpush1.msra.mxu0 0.0
        %240 = vmatprep.subr.mxu0 0.0
        %241 = vmatpush1.msra.mxu0 0.0
        %242 = vmatprep.subr.mxu0 0.0
        %243 = vmatpush1.msra.mxu0 0.0
        %244 = vmatprep.subr.mxu0 0.0
        %245 = vmatpush1.msra.mxu0 0.0
        %246 = vmatprep.subr.mxu0 0.0
        %247 = vmatpush1.msra.mxu0 0.0
        %248 = vmatprep.subr.mxu0 0.0
        %249 = vmatpush1.msra.mxu0 0.0
        %250 = vmatprep.mubr.f32.mxu0 0.0
        %251 = vmatmul.mubr.f32.gmra.mrb[0].mxu0 %v184
        %v252 = vpop.f32.mrb[0].mxu0
        %v253 = vadd.f32 0.0, %v252
        %v254 = vpop.f32.mrb[0].mxu0
        %255 = vdwg.mxu0
        %v256 = vadd.f32 %v176, %v253
        %s257 = scalar_lea.vmem %s1, 32
        %v258 = vld [vmem:[%s257] sm:$0xff]
        %v259 = vld [vmem:[%s257 + $0x8] sm:$0xff]
        %v260 = vld [vmem:[%s257 + $0x10] sm:$0xff]
        %v261 = vld [vmem:[%s257 + $0x18] sm:$0xff]
        %vm263 = vcmask 1046528
        %v264 = vrot.slane %v169, 1
        %v265 = vrot.slane %v170, 1
        %v266 = vsel %vm263, %v264, %v265
        %v267 = vsel %vm182, %v266, 0
        %269 = vmatprep.subr.mxu0 0.0
        %270 = vmatpush1.msra.mxu0 %v258
        %271 = vmatprep.subr.mxu0 0.0
        %272 = vmatpush1.msra.mxu0 %v259
        %273 = vmatprep.subr.mxu0 0.0
        %274 = vmatpush1.msra.mxu0 %v260
        %275 = vmatprep.subr.mxu0 0.0
        %276 = vmatpush1.msra.mxu0 %v261
        %277 = vmatprep.subr.mxu0 0.0
        %278 = vmatpush1.msra.mxu0 0.0
        %279 = vmatprep.subr.mxu0 0.0
        %280 = vmatpush1.msra.mxu0 0.0
        %281 = vmatprep.subr.mxu0 0.0
        %282 = vmatpush1.msra.mxu0 0.0
        %283 = vmatprep.subr.mxu0 0.0
        %284 = vmatpush1.msra.mxu0 0.0
        %285 = vmatprep.subr.mxu0 0.0
        %286 = vmatpush1.msra.mxu0 0.0
        %287 = vmatprep.subr.mxu0 0.0
        %288 = vmatpush1.msra.mxu0 0.0
        %289 = vmatprep.subr.mxu0 0.0
        %290 = vmatpush1.msra.mxu0 0.0
        %291 = vmatprep.subr.mxu0 0.0
        %292 = vmatpush1.msra.mxu0 0.0
        %293 = vmatprep.subr.mxu0 0.0
        %294 = vmatpush1.msra.mxu0 0.0
        %295 = vmatprep.subr.mxu0 0.0
        %296 = vmatpush1.msra.mxu0 0.0
        %297 = vmatprep.subr.mxu0 0.0
        %298 = vmatpush1.msra.mxu0 0.0
        %299 = vmatprep.subr.mxu0 0.0
        %300 = vmatpush1.msra.mxu0 0.0
        %301 = vmatprep.subr.mxu0 0.0
        %302 = vmatpush1.msra.mxu0 0.0
        %303 = vmatprep.subr.mxu0 0.0
        %304 = vmatpush1.msra.mxu0 0.0
        %305 = vmatprep.subr.mxu0 0.0
        %306 = vmatpush1.msra.mxu0 0.0
        %307 = vmatprep.subr.mxu0 0.0
        %308 = vmatpush1.msra.mxu0 0.0
        %309 = vmatprep.subr.mxu0 0.0
        %310 = vmatpush1.msra.mxu0 0.0
        %311 = vmatprep.subr.mxu0 0.0
        %312 = vmatpush1.msra.mxu0 0.0
        %313 = vmatprep.subr.mxu0 0.0
        %314 = vmatpush1.msra.mxu0 0.0
        %315 = vmatprep.subr.mxu0 0.0
        %316 = vmatpush1.msra.mxu0 0.0
        %317 = vmatprep.subr.mxu0 0.0
        %318 = vmatpush1.msra.mxu0 0.0
        %319 = vmatprep.subr.mxu0 0.0
        %320 = vmatpush1.msra.mxu0 0.0
        %321 = vmatprep.subr.mxu0 0.0
        %322 = vmatpush1.msra.mxu0 0.0
        %323 = vmatprep.subr.mxu0 0.0
        %324 = vmatpush1.msra.mxu0 0.0
        %325 = vmatprep.subr.mxu0 0.0
        %326 = vmatpush1.msra.mxu0 0.0
        %327 = vmatprep.subr.mxu0 0.0
        %328 = vmatpush1.msra.mxu0 0.0
        %329 = vmatprep.subr.mxu0 0.0
        %330 = vmatpush1.msra.mxu0 0.0
        %331 = vmatprep.subr.mxu0 0.0
        %332 = vmatpush1.msra.mxu0 0.0
        %333 = vmatprep.mubr.f32.mxu0 0.0
        %334 = vmatmul.mubr.f32.gmra.mrb[0].mxu0 %v267
        %v335 = vpop.f32.mrb[0].mxu0
        %v336 = vadd.f32 0.0, %v335
        %v337 = vpop.f32.mrb[0].mxu0
        %338 = vdwg.mxu0
        %v339 = vadd.f32 %v256, %v336
        %s340 = scalar_lea.vmem %s1, 64
        %v341 = vld [vmem:[%s340] sm:$0xff]
        %v342 = vld [vmem:[%s340 + $0x8] sm:$0xff]
        %v343 = vld [vmem:[%s340 + $0x10] sm:$0xff]
        %v344 = vld [vmem:[%s340 + $0x18] sm:$0xff]
        %vm345 = vcmask 1045504
        %v346 = vrot.slane %v169, 2
        %v347 = vrot.slane %v170, 2
        %v348 = vsel %vm345, %v346, %v347
        %v349 = vsel %vm182, %v348, 0
        %351 = vmatprep.subr.mxu0 0.0
        %352 = vmatpush1.msra.mxu0 %v341
        %353 = vmatprep.subr.mxu0 0.0
        %354 = vmatpush1.msra.mxu0 %v342
        %355 = vmatprep.subr.mxu0 0.0
        %356 = vmatpush1.msra.mxu0 %v343
        %357 = vmatprep.subr.mxu0 0.0
        %358 = vmatpush1.msra.mxu0 %v344
        %359 = vmatprep.subr.mxu0 0.0
        %360 = vmatpush1.msra.mxu0 0.0
        %361 = vmatprep.subr.mxu0 0.0
        %362 = vmatpush1.msra.mxu0 0.0
        %363 = vmatprep.subr.mxu0 0.0
        %364 = vmatpush1.msra.mxu0 0.0
        %365 = vmatprep.subr.mxu0 0.0
        %366 = vmatpush1.msra.mxu0 0.0
        %367 = vmatprep.subr.mxu0 0.0
        %368 = vmatpush1.msra.mxu0 0.0
        %369 = vmatprep.subr.mxu0 0.0
        %370 = vmatpush1.msra.mxu0 0.0
        %371 = vmatprep.subr.mxu0 0.0
        %372 = vmatpush1.msra.mxu0 0.0
        %373 = vmatprep.subr.mxu0 0.0
        %374 = vmatpush1.msra.mxu0 0.0
        %375 = vmatprep.subr.mxu0 0.0
        %376 = vmatpush1.msra.mxu0 0.0
        %377 = vmatprep.subr.mxu0 0.0
        %378 = vmatpush1.msra.mxu0 0.0
        %379 = vmatprep.subr.mxu0 0.0
        %380 = vmatpush1.msra.mxu0 0.0
        %381 = vmatprep.subr.mxu0 0.0
        %382 = vmatpush1.msra.mxu0 0.0
        %383 = vmatprep.subr.mxu0 0.0
        %384 = vmatpush1.msra.mxu0 0.0
        %385 = vmatprep.subr.mxu0 0.0
        %386 = vmatpush1.msra.mxu0 0.0
        %387 = vmatprep.subr.mxu0 0.0
        %388 = vmatpush1.msra.mxu0 0.0
        %389 = vmatprep.subr.mxu0 0.0
        %390 = vmatpush1.msra.mxu0 0.0
        %391 = vmatprep.subr.mxu0 0.0
        %392 = vmatpush1.msra.mxu0 0.0
        %393 = vmatprep.subr.mxu0 0.0
        %394 = vmatpush1.msra.mxu0 0.0
        %395 = vmatprep.subr.mxu0 0.0
        %396 = vmatpush1.msra.mxu0 0.0
        %397 = vmatprep.subr.mxu0 0.0
        %398 = vmatpush1.msra.mxu0 0.0
        %399 = vmatprep.subr.mxu0 0.0
        %400 = vmatpush1.msra.mxu0 0.0
        %401 = vmatprep.subr.mxu0 0.0
        %402 = vmatpush1.msra.mxu0 0.0
        %403 = vmatprep.subr.mxu0 0.0
        %404 = vmatpush1.msra.mxu0 0.0
        %405 = vmatprep.subr.mxu0 0.0
        %406 = vmatpush1.msra.mxu0 0.0
        %407 = vmatprep.subr.mxu0 0.0
        %408 = vmatpush1.msra.mxu0 0.0
        %409 = vmatprep.subr.mxu0 0.0
        %410 = vmatpush1.msra.mxu0 0.0
        %411 = vmatprep.subr.mxu0 0.0
        %412 = vmatpush1.msra.mxu0 0.0
        %413 = vmatprep.subr.mxu0 0.0
        %414 = vmatpush1.msra.mxu0 0.0
        %415 = vmatprep.mubr.f32.mxu0 0.0
        %416 = vmatmul.mubr.f32.gmra.mrb[0].mxu0 %v349
        %v417 = vpop.f32.mrb[0].mxu0
        %v418 = vadd.f32 0.0, %v417
        %v419 = vpop.f32.mrb[0].mxu0
        %420 = vdwg.mxu0
        %v421 = vadd.f32 %v339, %v418
        %422 = vst.msk [vmem:[%s163] sm:$0xff] %vm182, %v421
        %s423 = sand.u32 %s93, 1
        %s424 = scalar_lea.sflag [#allocation3], %s423
        %s425 = sand.u32 %s93, 1
        %s426 = smul.addr %s425, 8
        %s427 = scalar_lea.vmem [#allocation2], %s426
        // Predicated region
        $region33: #{conv1d_same.1} parent=31 // pred_check
          %p428 = pneg %p103
        $region34: #{conv1d_same.1} parent=31 // pred_check_branch
          %430 = sbr.rel (%p428) target = $region36
        $region35: #{conv1d_same.1} parent=31 // pred_region
          %s432 = ssub.s32 128, 128
          %433 = vsyncadd %s424, %s432
          %s434 = smul.addr %s17, 128
          %s435 = scalar_lea.hbm %s3, %s434
          %s437 = sshll.u32 %s427, 4
          %s438 = int_to_ptr.vmem [resolvable:$true] %s437
          %440 = dma.vmem_to_hbm [thread:$0]  %s438, 128, %s435, %s424
        $region36: #{conv1d_same.1} parent=31 // pred_fallthru
          _
      $region32: #{conv1d_same.1} parent=5 // pred_fallthru
        _
      %p441 = scmp.le.s32.totalorder 2, %s12
      // Predicated region
      $region37: #{conv1d_same.1} parent=5 // pred_check
        %p442 = pneg %p441
      $region38: #{conv1d_same.1} parent=5 // pred_check_branch
        %444 = sbr.rel (%p442) target = $region40
      $region39: #{conv1d_same.1} parent=5 // pred_region
        %s445 = ssub.s32 %s12, 2
        // Predicated region
        $region41: #{conv1d_same.1} parent=39 // pred_check
          %p446 = pneg %p109
        $region42: #{conv1d_same.1} parent=39 // pred_check_branch
          %448 = sbr.rel (%p446) target = $region44
        $region43: #{conv1d_same.1} parent=39 // pred_region
          %s449 = sand.u32 %s94, 1
          %s450 = scalar_lea.sflag [#allocation3], %s449
          %s451 = sand.u32 %s94, 1
          %s452 = smul.addr %s451, 8
          %s453 = scalar_lea.vmem [#allocation2], %s452
          %454 = dma.done %s450, 128
        $region44: #{conv1d_same.1} parent=39 // pred_fallthru
          _
      $region40: #{conv1d_same.1} parent=5 // pred_fallthru
        _
    $region6: #{conv1d_same.1} parent=1 // loop_footer
      %s16 = sadd.s32 1, %s12
    $region7: #{conv1d_same.1} parent=1 // loop_footer_branch
      %11 = sbr.rel target = $region3
    $region8: #{conv1d_same.1} parent=1 // loop_exit
      _
    %455 = vsyncpa [#allocation3], 1
    %s456 = scalar_lea.sflag [#allocation3], 1
    %457 = vsyncpa %s456, 1

</llo_original>
